<compile_context>
chip_gen: v7x
topology: tpu7x:2x2x1
jax: 0.10.0
libtpu: 0.0.40
codegen_flags: <defaults>
</compile_context>

<pallas_src>
import jax
import jax.numpy as jnp
from jax.experimental import pallas as pl
from jax.experimental.pallas import tpu as pltpu

_LANE = 128


def _ew_kernel(w_ref, x_ref, o_ref):
    # w_ref: (1, tile_d), x_ref/o_ref: (tile_b, tile_d).
    # Pure VPU elementwise multiply with broadcast along the sublane axis.
    o_ref[...] = x_ref[...] * w_ref[...]


def _select_tiles(R: int, C: int, itemsize: int, target_bytes: int = 4 << 20):
    """Pick (tile_b, tile_d) giving ~target_bytes lane-dense blocks."""
    # Lane (last-dim) tile: a multiple of 128 when possible, else the full dim.
    if C % _LANE == 0:
        tile_d = min(C, 16 * _LANE)  # <= 2048 lanes per block
    else:
        tile_d = C
    # Sublane (row) tile: multiple of the dtype's sublane packing.
    sub = max(8, 32 // itemsize)  # 8 for f32, 16 for bf16, 32 for int8
    if R <= sub:
        return R, tile_d  # full dim: always a legal block shape
    rows = max(sub, target_bytes // (tile_d * itemsize))
    tile_b = max(sub, (min(rows, R) // sub) * sub)
    if tile_b >= R:
        # Force >= 2 row-blocks so the grid can shard across v7x's 2 TensorCores.
        half = -(-R // 2)
        tile_b = ((half + sub - 1) // sub) * sub
    return tile_b, tile_d


def ew_layer(x: jax.Array, w: jax.Array) -> jax.Array:
    """Compute w * x where w has shape (D,) and x has shape (..., D)."""
    orig_shape = x.shape
    D = orig_shape[-1]
    assert w.shape == (D,), f"weight shape {w.shape} != ({D},)"

    B = 1
    for s in orig_shape[:-1]:
        B *= int(s)
    x2 = x.reshape(B, D)
    w_cast = w.astype(x.dtype)  # avoid per-tile dtype promotion in the kernel

    if D % _LANE == 0:
        # Already lane-dense.
        R, C = B, D
        wrow = w_cast.reshape(1, D)
    elif (_LANE % D == 0) and ((B * D) % _LANE == 0):
        # Lane-densify small D: view the flat array as (B*D/128, 128). Since
        # D divides 128, every 128-lane row sees the same tiled weight pattern.
        R, C = (B * D) // _LANE, _LANE
        x2 = x2.reshape(R, C)
        wrow = jnp.tile(w_cast, _LANE // D).reshape(1, _LANE)
    else:
        # Fallback: full-D blocks (correct, but lane-sparse if D % 128 != 0).
        # TODO(synk): pad D up to a multiple of 128 for lane-dense stores here.
        R, C = B, D
        wrow = w_cast.reshape(1, D)

    itemsize = jnp.dtype(x.dtype).itemsize
    tile_b, tile_d = _select_tiles(R, C, itemsize)
    grid = (pl.cdiv(R, tile_b), pl.cdiv(C, tile_d))

    # Double-buffered x + out blocks, plus the (small) weight row, plus slack.
    block_bytes = tile_b * tile_d * itemsize
    vmem_bytes = 4 * block_bytes + 2 * tile_d * itemsize + (2 << 20)
    vmem_bytes = int(min(max(vmem_bytes, 32 << 20), 48 << 20))

    out2 = pl.pallas_call(
        _ew_kernel,
        out_shape=jax.ShapeDtypeStruct((R, C), x.dtype),
        grid=grid,
        in_specs=[
            pl.BlockSpec((1, tile_d), lambda i, j: (0, j)),       # weight row
            pl.BlockSpec((tile_b, tile_d), lambda i, j: (i, j)),  # x tile
        ],
        out_specs=pl.BlockSpec((tile_b, tile_d), lambda i, j: (i, j)),
        compiler_params=pltpu.CompilerParams(
            dimension_semantics=("parallel", "parallel"),
            vmem_limit_bytes=vmem_bytes,
        ),
    )(wrow, x2)

    return out2.reshape(orig_shape)


if __name__ == "__main__":
    key = jax.random.PRNGKey(0)
    k_w, k_x = jax.random.split(key)

    # Shapes implied by the module: hidden size 32, small batch.
    batch, input_size = 8, 32
    w = jax.random.uniform(k_w, (input_size,), dtype=jnp.float32)  # ~torch.rand
    x = jax.random.normal(k_x, (batch, input_size), dtype=jnp.float32)

    out = jax.block_until_ready(ew_layer(x, w))
    ref = w * x
    assert out.shape == x.shape
    assert jnp.allclose(out, ref, atol=1e-6, rtol=1e-6), "mismatch vs reference (small)"

    # Larger lane-aligned case exercising the 2-D tiled, multi-step grid path.
    k_w2, k_x2 = jax.random.split(jax.random.PRNGKey(1))
    B2, D2 = 256, 512
    w_big = jax.random.uniform(k_w2, (D2,), dtype=jnp.float32)
    x_big = jax.random.normal(k_x2, (B2, D2), dtype=jnp.float32)
    out_big = jax.block_until_ready(ew_layer(x_big, w_big))
    assert jnp.allclose(out_big, w_big * x_big, atol=1e-6, rtol=1e-6), \
        "mismatch vs reference (tiled)"

    print("KERNEL_OK")
</pallas_src>

<mosaic_0001>
module attributes {stable_mosaic.version = 11 : i64} {
  func.func @_ew_kernel(%arg0: i32, %arg1: i32, %arg2: memref<1x128xf32, #tpu.memory_space<vmem>>, %arg3: memref<2x128xf32, #tpu.memory_space<vmem>>, %arg4: memref<2x128xf32, #tpu.memory_space<vmem>>) attributes {dimension_semantics = [#tpu.dimension_semantics<parallel>, #tpu.dimension_semantics<parallel>], iteration_bounds = array<i64: 1, 1>, scalar_prefetch = 0 : i64, scratch_operands = 0 : i64, tpu.core_type = #tpu.core_type<tc>, window_params = [{transform_indices = @transform_0, window_bounds = array<i64: 1, 128>}, {transform_indices = @transform_1, window_bounds = array<i64: 2, 128>}, {transform_indices = @transform_2, window_bounds = array<i64: 2, 128>}]} {
    %c0 = arith.constant 0 : index
    %c0_0 = arith.constant 0 : index
    %0 = vector.load %arg3[%c0, %c0_0] : memref<2x128xf32, #tpu.memory_space<vmem>>, vector<2x128xf32>
    %c0_1 = arith.constant 0 : index
    %c0_2 = arith.constant 0 : index
    %1 = vector.load %arg2[%c0_1, %c0_2] : memref<1x128xf32, #tpu.memory_space<vmem>>, vector<1x128xf32>
    %2 = vector.broadcast %1 : vector<1x128xf32> to vector<2x128xf32>
    %3 = arith.mulf %0, %2 : vector<2x128xf32>
    %c0_3 = arith.constant 0 : index
    %c0_4 = arith.constant 0 : index
    %4 = vector.load %arg4[%c0_3, %c0_4] : memref<2x128xf32, #tpu.memory_space<vmem>>, vector<2x128xf32>
    tpu.vector_store %arg4[%c0_3, %c0_4], %3 {strides = array<i32>} : memref<2x128xf32, #tpu.memory_space<vmem>>, vector<2x128xf32>,
    return
  }
  func.func @transform_0(%arg0: i32, %arg1: i32) -> (i32, i32) {
    %c0_i32 = arith.constant 0 : i32
    %c0_i32_0 = arith.constant 0 : i32
    return %c0_i32, %arg1 : i32, i32
  }
  func.func @transform_1(%arg0: i32, %arg1: i32) -> (i32, i32) {
    %c0_i32 = arith.constant 0 : i32
    return %arg0, %arg1 : i32, i32
  }
  func.func @transform_2(%arg0: i32, %arg1: i32) -> (i32, i32) {
    %c0_i32 = arith.constant 0 : i32
    return %arg0, %arg1 : i32, i32
  }
}

</mosaic_0001>

<llo_original>
// kernel: tpu_custom_call.1
$region0: #{tpu_custom_call.1}
  #allocation0 [shape = 'u32[]', space=smem, size = 0x4, offset = 0x4, fixed_abs, tag = 'smem constant byte address 0x4 - core index']
  #allocation1 [shape = 'u32[144,128]{1,0:T(1,128)}', space=vmem, size = 0x12000, scoped, tag = 'internal scratch']
  %s0 = inlined_call_operand.hbm [shape: f32[1,128], index: 0, kind: input, shape index: {}]
  %s1 = inlined_call_operand.vmem [shape: f32[2,128], index: 1, kind: input, shape index: {}]
  %s2 = inlined_call_operand.hbm [shape: f32[2,128], index: 2, kind: output, shape index: {}]
  %s3 = sld [smem:[#allocation0]]
  $region22: #{tpu_custom_call.1} parent=0
    _
  %s5 = ssub.s32 1, %s3
  %s6 = scalar_select 0, %s5, %s3
  $region1: #{tpu_custom_call.1} parent=0
    #allocation2 [shape = 'u8[512]{0}', space=vmem, size = 0x400, scoped, tag = 'input window, operand 0, single buffered']
    #allocation3 [shape = 's32[1]{0}', space=sflag, size = 0x4, scoped, tag = 'scoped memory for tpu_custom_call.1']
    #allocation4 [shape = 's32[1]{0}', space=sflag, size = 0x4, scoped, tag = 'scoped memory for tpu_custom_call.1']
    #allocation5 [shape = 'u8[1024]{0}', space=vmem, size = 0x400, scoped, tag = 'output window, operand 0, single buffered']
    %7 = vsyncpa [#allocation3], 0
    %8 = vsyncpa [#allocation4], 0
    // Predicated region
    $region2: #{tpu_custom_call.1} parent=1 // pred_check
      _
    $region3: #{tpu_custom_call.1} parent=1 // pred_check_branch
      %10 = sbr.rel (0) target = $region5
    $region4: #{tpu_custom_call.1} parent=1 // pred_region
      %s12 = ssub.s32 16, 16
      %13 = vsyncadd [#allocation3], %s12
      %s15 = sshll.u32 [#allocation2], 4
      %s16 = int_to_ptr.vmem [resolvable:$true] %s15
      %18 = dma.hbm_to_vmem [thread:$0]  %s0, 16, %s16, [#allocation3]
    $region5: #{tpu_custom_call.1} parent=1 // pred_fallthru
      _
    // Predicated region
    $region6: #{tpu_custom_call.1} parent=1 // pred_check
      _
    $region7: #{tpu_custom_call.1} parent=1 // pred_check_branch
      %20 = sbr.rel (0) target = $region9
    $region8: #{tpu_custom_call.1} parent=1 // pred_region
      _
    $region9: #{tpu_custom_call.1} parent=1 // pred_fallthru
      _
    // Predicated region
    $region10: #{tpu_custom_call.1} parent=1 // pred_check
      _
    $region11: #{tpu_custom_call.1} parent=1 // pred_check_branch
      %22 = sbr.rel (0) target = $region13
    $region12: #{tpu_custom_call.1} parent=1 // pred_region
      %23 = dma.done [#allocation3], 16
    $region13: #{tpu_custom_call.1} parent=1 // pred_fallthru
      _
    %v24 = vld [vmem:[%s1] sm:$0x3]
    %v25 = vld [vmem:[#allocation2] sm:$0x1]
    %v27 = vlaneseq
    %v28 = vshrl.u32 %v27, 7
    %v29 = vsub.s32 0, %v28
    %v30 = vrot.slane %v25, %v29
    %v32 = vmul.f32 %v24, %v30
    %33 = vst [vmem:[#allocation5] sm:$0x3] %v32
    // Predicated region
    $region14: #{tpu_custom_call.1} parent=1 // pred_check
      _
    $region15: #{tpu_custom_call.1} parent=1 // pred_check_branch
      %35 = sbr.rel (0) target = $region17
    $region16: #{tpu_custom_call.1} parent=1 // pred_region
      %s37 = ssub.s32 32, 32
      %38 = vsyncadd [#allocation4], %s37
      %s40 = sshll.u32 [#allocation5], 4
      %s41 = int_to_ptr.vmem [resolvable:$true] %s40
      %43 = dma.vmem_to_hbm [thread:$0]  %s41, 32, %s2, [#allocation4]
    $region17: #{tpu_custom_call.1} parent=1 // pred_fallthru
      _
    // Predicated region
    $region18: #{tpu_custom_call.1} parent=1 // pred_check
      _
    $region19: #{tpu_custom_call.1} parent=1 // pred_check_branch
      %45 = sbr.rel (0) target = $region21
    $region20: #{tpu_custom_call.1} parent=1 // pred_region
      %46 = dma.done [#allocation4], 32
    $region21: #{tpu_custom_call.1} parent=1 // pred_fallthru
      _
    %47 = vsyncpa [#allocation3], 1
    %48 = vsyncpa [#allocation4], 1

</llo_original>
